<compile_context>
chip_gen: v5e
topology: v5e:2x2
jax: 0.10.0
libtpu: 0.0.40
codegen_flags: <defaults>
</compile_context>

<pallas_src>
import functools
import math

import jax
import jax.numpy as jnp
from jax.experimental import pallas as pl
from jax.experimental.pallas import tpu as pltpu


LANE = 128                      # TPU lane width (minimum last-dim granule)
_EXP_NEG_HALF = math.exp(-0.5)  # compile-time constant, matches torch.exp(tensor(-0.5))


def _optimize_kernel(x_ref, o_ref, *, alpha):
    # x_ref/o_ref: VMEM tiles (tile_rows, width) in the input's native dtype.
    x = x_ref[...].astype(jnp.float32)
    y = jnp.float32(alpha) * (
        jnp.exp(-jnp.abs(x - jnp.float32(0.5))) - jnp.float32(_EXP_NEG_HALF)
    ) + jnp.float32(1.0)
    o_ref[...] = (y * x).astype(o_ref.dtype)


def optimize_module(x, alpha, *, target_block_bytes=1 << 20, min_grid_steps=8):
    """y = (alpha*(exp(-|x-0.5|) - e^{-0.5}) + 1) * x, elementwise, any shape."""
    orig_shape = x.shape
    orig_dtype = x.dtype
    n = x.size

    xf = x.reshape(-1)

    # Widest lane-dense slab width that divides n (wider -> longer unmasked
    # stores and fewer DMA descriptors). Fall back to padding to 128 only if
    # n is not a multiple of 128 (rare for NCHW activations).
    width = None
    for w in (1024, 512, 256, LANE):
        if n % w == 0:
            width = w
            break
    if width is None:
        width = LANE
        xf = jnp.pad(xf, (0, (-n) % LANE))
    rows = xf.shape[0] // width
    x2d = xf.reshape(rows, width)

    # ~1 MiB per block in the native dtype (in+out double-buffered stays well
    # under v5e's 16 MiB default scoped VMEM). Cap so the grid keeps at least
    # `min_grid_steps` steps when the tensor is big enough (v7x megacore).
    itemsize = x2d.dtype.itemsize
    tile_rows = max(8, (target_block_bytes // (width * itemsize)) // 8 * 8)
    cap = max(8, ((pl.cdiv(rows, min_grid_steps) + 7) // 8) * 8)
    tile_rows = min(tile_rows, cap)
    if tile_rows >= rows:
        tile_rows = rows  # single full-extent block for small inputs
    grid = (pl.cdiv(rows, tile_rows),)

    out2d = pl.pallas_call(
        functools.partial(_optimize_kernel, alpha=float(alpha)),
        out_shape=jax.ShapeDtypeStruct((rows, width), orig_dtype),
        grid=grid,
        in_specs=[pl.BlockSpec((tile_rows, width), lambda i: (i, 0))],
        out_specs=pl.BlockSpec((tile_rows, width), lambda i: (i, 0)),
        compiler_params=pltpu.CompilerParams(
            dimension_semantics=("parallel",),
        ),
    )(x2d)

    return out2d.reshape(-1)[:n].reshape(orig_shape)


def _reference(x, alpha):
    y = alpha * (jnp.exp(-jnp.abs(x - 0.5)) - jnp.exp(jnp.float32(-0.5))) + 1.0
    return y * x


if __name__ == "__main__":
    key = jax.random.PRNGKey(0)
    alpha = 0.7
    x = jax.random.normal(key, (2, 4, 16, 16), dtype=jnp.float32)

    # f32 path
    out = jax.block_until_ready(optimize_module(x, alpha))
    ref = _reference(x, alpha)
    assert out.shape == x.shape and out.dtype == x.dtype
    assert jnp.allclose(out, ref, atol=1e-5, rtol=1e-5), "f32 mismatch vs reference"

    # bf16 path (native-dtype HBM traffic, f32 compute in-kernel)
    xb = x.astype(jnp.bfloat16)
    outb = jax.block_until_ready(optimize_module(xb, alpha))
    refb = _reference(xb.astype(jnp.float32), alpha).astype(jnp.bfloat16)
    assert outb.dtype == jnp.bfloat16 and outb.shape == xb.shape
    assert jnp.allclose(outb.astype(jnp.float32), refb.astype(jnp.float32),
                        atol=1e-2, rtol=1e-2), "bf16 mismatch vs reference"

    print("KERNEL_OK")
</pallas_src>

<mosaic_0001>
module attributes {stable_mosaic.version = 11 : i64} {
  func.func @_optimize_kernel(%arg0: i32, %arg1: memref<2x1024xf32, #tpu.memory_space<vmem>>, %arg2: memref<2x1024xf32, #tpu.memory_space<vmem>>) attributes {dimension_semantics = [#tpu.dimension_semantics<parallel>], iteration_bounds = array<i64: 1>, scalar_prefetch = 0 : i64, scratch_operands = 0 : i64, tpu.core_type = #tpu.core_type<tc>, window_params = [{transform_indices = @transform_0, window_bounds = array<i64: 2, 1024>}, {transform_indices = @transform_1, window_bounds = array<i64: 2, 1024>}]} {
    %c0 = arith.constant 0 : index
    %c0_0 = arith.constant 0 : index
    %0 = vector.load %arg1[%c0, %c0_0] : memref<2x1024xf32, #tpu.memory_space<vmem>>, vector<2x1024xf32>
    %cst = arith.constant 5.000000e-01 : f32
    %1 = vector.broadcast %cst : f32 to vector<2x1024xf32>
    %2 = arith.subf %0, %1 : vector<2x1024xf32>
    %3 = math.absf %2 : vector<2x1024xf32>
    %cst_1 = arith.constant 0.000000e+00 : f32
    %4 = vector.broadcast %cst_1 : f32 to vector<2x1024xf32>
    %5 = arith.subf %4, %3 : vector<2x1024xf32>
    %6 = math.exp %5 : vector<2x1024xf32>
    %cst_2 = arith.constant 0.606530666 : f32
    %7 = vector.broadcast %cst_2 : f32 to vector<2x1024xf32>
    %8 = arith.subf %6, %7 : vector<2x1024xf32>
    %cst_3 = arith.constant 0.699999988 : f32
    %9 = vector.broadcast %cst_3 : f32 to vector<2x1024xf32>
    %10 = arith.mulf %9, %8 : vector<2x1024xf32>
    %cst_4 = arith.constant 1.000000e+00 : f32
    %11 = vector.broadcast %cst_4 : f32 to vector<2x1024xf32>
    %12 = arith.addf %10, %11 : vector<2x1024xf32>
    %13 = arith.mulf %12, %0 : vector<2x1024xf32>
    %c0_5 = arith.constant 0 : index
    %c0_6 = arith.constant 0 : index
    %14 = vector.load %arg2[%c0_5, %c0_6] : memref<2x1024xf32, #tpu.memory_space<vmem>>, vector<2x1024xf32>
    tpu.vector_store %arg2[%c0_5, %c0_6], %13 {strides = array<i32>} : memref<2x1024xf32, #tpu.memory_space<vmem>>, vector<2x1024xf32>,
    return
  }
  func.func @transform_0(%arg0: i32) -> (i32, i32) {
    %c0_i32 = arith.constant 0 : i32
    %c0_i32_0 = arith.constant 0 : i32
    return %arg0, %c0_i32 : i32, i32
  }
  func.func @transform_1(%arg0: i32) -> (i32, i32) {
    %c0_i32 = arith.constant 0 : i32
    %c0_i32_0 = arith.constant 0 : i32
    return %arg0, %c0_i32 : i32, i32
  }
}

</mosaic_0001>

<llo_original>
// kernel: tpu_custom_call.1
$region0: #{tpu_custom_call.1}
  #allocation0 [shape = 'u32[]', space=smem, size = 0x4, offset = 0x4, fixed_abs, tag = 'smem constant byte address 0x4 - core index']
  #allocation1 [shape = 'u32[72,128]{1,0:T(1,128)}', space=vmem, size = 0x9000, scoped, tag = 'internal scratch']
  %s0 = inlined_call_operand.hbm [shape: f32[2,1024], index: 0, kind: input, shape index: {}]
  %s1 = inlined_call_operand.hbm [shape: f32[2,1024], index: 1, kind: output, shape index: {}]
  %s2 = sld [smem:[#allocation0]]
  $region18: #{tpu_custom_call.1} parent=0
    _
  %s4 = ssub.s32 1, %s2
  %s5 = scalar_select 0, %s4, %s2
  $region1: #{tpu_custom_call.1} parent=0
    #allocation2 [shape = 'u8[8192]{0}', space=vmem, size = 0x2000, scoped, tag = 'input window, operand 0, single buffered']
    #allocation3 [shape = 's32[1]{0}', space=sflag, size = 0x4, scoped, tag = 'scoped memory for tpu_custom_call.1']
    #allocation4 [shape = 's32[1]{0}', space=sflag, size = 0x4, scoped, tag = 'scoped memory for tpu_custom_call.1']
    #allocation5 [shape = 'u8[8192]{0}', space=vmem, size = 0x2000, scoped, tag = 'output window, operand 0, single buffered']
    %6 = vsyncpa [#allocation3], 0
    %7 = vsyncpa [#allocation4], 0
    // Predicated region
    $region2: #{tpu_custom_call.1} parent=1 // pred_check
      _
    $region3: #{tpu_custom_call.1} parent=1 // pred_check_branch
      %9 = sbr.rel (0) target = $region5
    $region4: #{tpu_custom_call.1} parent=1 // pred_region
      %11 = vsyncadd [#allocation3], 0
      %s13 = sshll.u32 %s0, 4
      %s14 = int_to_ptr.hbm [resolvable:$true] %s13
      %s15 = sshll.u32 [#allocation2], 4
      %s16 = int_to_ptr.vmem [resolvable:$true] %s15
      %18 = dma.hbm_to_vmem [thread:$0]  %s14, 256, %s16, [#allocation3]
    $region5: #{tpu_custom_call.1} parent=1 // pred_fallthru
      _
    // Predicated region
    $region6: #{tpu_custom_call.1} parent=1 // pred_check
      _
    $region7: #{tpu_custom_call.1} parent=1 // pred_check_branch
      %20 = sbr.rel (0) target = $region9
    $region8: #{tpu_custom_call.1} parent=1 // pred_region
      %22 = dma.done [#allocation3], 256
    $region9: #{tpu_custom_call.1} parent=1 // pred_fallthru
      _
    %v23 = vld [vmem:[#allocation2] sm:$0xff]
    %v24 = vld [vmem:[#allocation2 + $0x8] sm:$0xff]
    %v25 = vsub.f32 %v23, 0.5
    %v26 = vsub.f32 %v24, 0.5
    %v27 = vand.u32 2147483647, %v25
    %v28 = vand.u32 2147483647, %v26
    %v29 = vsub.f32 0.0, %v27
    %v30 = vsub.f32 0.0, %v28
    %v31 = vmul.f32 %v29, 1.442695
    %v32 = vpow.pop %v31
    %v33 = vmul.f32 %v30, 1.442695
    %v34 = vpow.pop %v33
    %v35 = vsub.f32 %v32, 0.60653067
    %v36 = vsub.f32 %v34, 0.60653067
    %v37 = vmul.f32 %v35, 0.7
    %v38 = vmul.f32 %v36, 0.7
    %v39 = vadd.f32 %v37, 1.0
    %v40 = vadd.f32 %v38, 1.0
    %v41 = vmul.f32 %v39, %v23
    %v42 = vmul.f32 %v40, %v24
    %43 = vst [vmem:[#allocation5] sm:$0xff] %v41
    %44 = vst [vmem:[#allocation5 + $0x8] sm:$0xff] %v42
    // Predicated region
    $region10: #{tpu_custom_call.1} parent=1 // pred_check
      _
    $region11: #{tpu_custom_call.1} parent=1 // pred_check_branch
      %46 = sbr.rel (0) target = $region13
    $region12: #{tpu_custom_call.1} parent=1 // pred_region
      %48 = vsyncadd [#allocation4], 0
      %s50 = sshll.u32 [#allocation5], 4
      %s51 = int_to_ptr.vmem [resolvable:$true] %s50
      %s52 = sshll.u32 %s1, 4
      %s53 = int_to_ptr.hbm [resolvable:$true] %s52
      %55 = dma.vmem_to_hbm [thread:$0]  %s51, 256, %s53, [#allocation4]
    $region13: #{tpu_custom_call.1} parent=1 // pred_fallthru
      _
    // Predicated region
    $region14: #{tpu_custom_call.1} parent=1 // pred_check
      _
    $region15: #{tpu_custom_call.1} parent=1 // pred_check_branch
      %57 = sbr.rel (0) target = $region17
    $region16: #{tpu_custom_call.1} parent=1 // pred_region
      %59 = dma.done [#allocation4], 256
    $region17: #{tpu_custom_call.1} parent=1 // pred_fallthru
      _
    %60 = vsyncpa [#allocation3], 1
    %61 = vsyncpa [#allocation4], 1

</llo_original>
